<compile_context>
chip_gen: v7x
topology: tpu7x:2x2x1
jax: 0.10.0
libtpu: 0.0.40
codegen_flags: <defaults>
</compile_context>

<pallas_src>
import jax
import jax.numpy as jnp
import numpy as np
from jax.experimental import pallas as pl
from jax.experimental.pallas import tpu as pltpu


def _qmaxamp_pool_kernel(x_ref, o_ref):
    """Quaternion max-amplitude 2x2/2 pooling on one block.

    x_ref: (1, 4, Cq_b, 2*Ho_b, W)  rows (H) and cols (W) still interleaved
    o_ref: (1, 4, Cq_b, Ho_b,  W)   winner of each 2x2 window placed at even lanes
    """
    ho_b = o_ref.shape[3]
    w = o_ref.shape[4]

    # Row (H) de-interleave via sublane-strided loads:
    #   even rows = window row 0, odd rows = window row 1.
    top = x_ref[:, :, :, pl.ds(0, ho_b, stride=2), :]
    bot = x_ref[:, :, :, pl.ds(1, ho_b, stride=2), :]

    # Column helper: next_col(v)[..., w] == v[..., w+1] for every non-wrap lane.
    # Built from two rolls plus an iota probe so the result is independent of the
    # roll sign convention; the wrap lane (last lane, odd) is discarded anyway.
    ids = jax.lax.broadcasted_iota(jnp.int32, (1, 1, 1, 1, w), 4)
    roll_a_is_next = pltpu.roll(ids, 1, axis=4) == ids + 1

    def next_col(v):
        a = pltpu.roll(v, 1, axis=4)
        b = pltpu.roll(v, w - 1, axis=4)
        return jnp.where(roll_a_is_next, a, b)

    def amp2(v):
        # squared quaternion amplitude, accumulated in f32 over the component axis
        v32 = v.astype(jnp.float32)
        return jnp.sum(v32 * v32, axis=1, keepdims=True)

    # Candidates in PyTorch max_pool2d scan order: (0,0), (0,1), (1,0), (1,1).
    c0, c1, c2, c3 = top, next_col(top), bot, next_col(bot)

    best_v = c0
    best_a = amp2(c0)
    for cand in (c1, c2, c3):
        a = amp2(cand)
        upd = a > best_a                 # strict '>' => first max wins on ties
        best_v = jnp.where(upd, cand, best_v)   # broadcasts over component axis
        best_a = jnp.where(upd, a, best_a)

    o_ref[...] = best_v.astype(o_ref.dtype)


def _pick_tiles(cq, ho, w, itemsize, target_bytes=1 << 20):
    """Largest (Cq_b, Ho_b) tile whose input block 4*Cq_b*(2*Ho_b)*W stays under
    ~1 MiB.  Ho_b must be a multiple of 8 (or the full Ho) so the block's
    second-to-last dims remain layout-legal; Cq_b just divides Cq."""
    cq_divs = [d for d in range(1, cq + 1) if cq % d == 0]
    ho_divs = [d for d in range(1, ho + 1)
               if ho % d == 0 and (d == ho or d % 8 == 0)]
    pairs = [(c, h) for c in cq_divs for h in ho_divs]
    blk = lambda p: 4 * p[0] * (2 * p[1]) * w * itemsize
    fitting = [p for p in pairs if blk(p) <= target_bytes]
    return max(fitting, key=blk) if fitting else min(pairs, key=blk)


def quaternion_max_amp_pool2d(x):
    """QuaternionMaxAmpPool2d(2, 2) forward. x: (N, C, H, W), C % 4 == 0."""
    N, C, H, W = x.shape
    assert C % 4 == 0, "channel dim must hold 4 quaternion components"
    assert H % 2 == 0 and W % 2 == 0, "kernel=stride=2, no padding"
    Cq = C // 4
    Ho, Wo = H // 2, W // 2

    xr = x.reshape(N, 4, Cq, H, W)                 # free reshape, no copy

    Cq_b, Ho_b = _pick_tiles(Cq, Ho, W, x.dtype.itemsize)
    H_blk = 2 * Ho_b
    grid = (N, Cq // Cq_b, Ho // Ho_b)

    in_spec = pl.BlockSpec((1, 4, Cq_b, H_blk, W), lambda n, c, h: (n, 0, c, h, 0))
    out_spec = pl.BlockSpec((1, 4, Cq_b, Ho_b, W), lambda n, c, h: (n, 0, c, h, 0))

    out_full = pl.pallas_call(
        _qmaxamp_pool_kernel,
        out_shape=jax.ShapeDtypeStruct((N, 4, Cq, Ho, W), x.dtype),
        grid=grid,
        in_specs=[in_spec],
        out_specs=out_spec,
        compiler_params=pltpu.CompilerParams(
            dimension_semantics=("parallel", "parallel", "parallel")),
    )(xr)

    # Final even-lane compaction (W -> Wo) on the half-sized slab, then restack
    # the quaternion components along the channel axis: cat([r, i, j, k], dim=1).
    out = out_full[..., ::2]
    return out.reshape(N, C, Ho, Wo)


def _reference(x):
    """Pure-JAX reference mirroring the PyTorch max_pool2d+gather semantics."""
    N, C, H, W = x.shape
    Cq = C // 4
    comps = jnp.split(x, 4, axis=1)                      # r, i, j, k: (N, Cq, H, W)
    amp = jnp.sqrt(sum(c * c for c in comps))

    def windows(a):
        return (a.reshape(N, Cq, H // 2, 2, W // 2, 2)
                 .transpose(0, 1, 2, 4, 3, 5)
                 .reshape(N, Cq, H // 2, W // 2, 4))

    idx = jnp.argmax(windows(amp), axis=-1)              # first max wins

    def gather(c):
        cw = windows(c)
        return jnp.take_along_axis(cw, idx[..., None], axis=-1)[..., 0]

    return jnp.concatenate([gather(c) for c in comps], axis=1)


if __name__ == "__main__":
    key = jax.random.PRNGKey(0)
    N, C, H, W = 2, 8, 16, 16          # C = 4 * Cq with Cq = 2
    x = jax.random.normal(key, (N, C, H, W), dtype=jnp.float32)

    pool = jax.jit(quaternion_max_amp_pool2d)
    out = jax.block_until_ready(pool(x))

    assert out.shape == (N, C, H // 2, W // 2), out.shape
    np.testing.assert_allclose(np.asarray(out), np.asarray(_reference(x)),
                               rtol=1e-6, atol=1e-6)
    print("KERNEL_OK")
</pallas_src>

<mosaic_0001>
module attributes {stable_mosaic.version = 11 : i64} {
  func.func @_qmaxamp_pool_kernel(%arg0: i32, %arg1: i32, %arg2: i32, %arg3: memref<1x4x2x16x16xf32, #tpu.memory_space<vmem>>, %arg4: memref<1x4x2x8x16xf32, #tpu.memory_space<vmem>>) attributes {dimension_semantics = [#tpu.dimension_semantics<parallel>, #tpu.dimension_semantics<parallel>, #tpu.dimension_semantics<parallel>], iteration_bounds = array<i64: 2, 1, 1>, scalar_prefetch = 0 : i64, scratch_operands = 0 : i64, tpu.core_type = #tpu.core_type<tc>, window_params = [{transform_indices = @transform_0, window_bounds = array<i64: 1, 4, 2, 16, 16>}, {transform_indices = @transform_1, window_bounds = array<i64: 1, 4, 2, 8, 16>}]} {
    %c0 = arith.constant 0 : index
    %c0_0 = arith.constant 0 : index
    %c0_1 = arith.constant 0 : index
    %c0_2 = arith.constant 0 : index
    %c0_3 = arith.constant 0 : index
    %0 = tpu.strided_load %arg3[%c0, %c0_0, %c0_1, %c0_2, %c0_3] {strides = array<i32: 1, 1, 1, 2, 1>} : memref<1x4x2x16x16xf32, #tpu.memory_space<vmem>>, vector<1x4x2x8x16xf32>
    %c0_4 = arith.constant 0 : index
    %c0_5 = arith.constant 0 : index
    %c0_6 = arith.constant 0 : index
    %c1 = arith.constant 1 : index
    %c0_7 = arith.constant 0 : index
    %1 = tpu.strided_load %arg3[%c0_4, %c0_5, %c0_6, %c1, %c0_7] {strides = array<i32: 1, 1, 1, 2, 1>} : memref<1x4x2x16x16xf32, #tpu.memory_space<vmem>>, vector<1x4x2x8x16xf32>
    %2 = tpu.iota {dimensions = array<i32: 4>} : vector<1x1x1x1x16xi32>
    %c1_i32 = arith.constant 1 : i32
    %3 = tpu.dynamic_rotate %2 by %c1_i32 dim 4 : vector<1x1x1x1x16xi32>, i32 -> vector<1x1x1x1x16xi32>
    %c1_i32_8 = arith.constant 1 : i32
    %4 = vector.broadcast %c1_i32_8 : i32 to vector<1x1x1x1x16xi32>
    %5 = arith.addi %2, %4 : vector<1x1x1x1x16xi32>
    %6 = arith.cmpi eq, %3, %5 : vector<1x1x1x1x16xi32>
    %c1_i32_9 = arith.constant 1 : i32
    %7 = tpu.dynamic_rotate %0 by %c1_i32_9 dim 4 : vector<1x4x2x8x16xf32>, i32 -> vector<1x4x2x8x16xf32>
    %c15_i32 = arith.constant 15 : i32
    %8 = tpu.dynamic_rotate %0 by %c15_i32 dim 4 : vector<1x4x2x8x16xf32>, i32 -> vector<1x4x2x8x16xf32>
    %9 = vector.shape_cast %6 : vector<1x1x1x1x16xi1> to vector<1x1x1x1x16xi1>
    %10 = vector.broadcast %9 : vector<1x1x1x1x16xi1> to vector<1x4x2x8x16xi1>
    %11 = arith.select %10, %7, %8 : vector<1x4x2x8x16xi1>, vector<1x4x2x8x16xf32>
    %c1_i32_10 = arith.constant 1 : i32
    %12 = tpu.dynamic_rotate %1 by %c1_i32_10 dim 4 : vector<1x4x2x8x16xf32>, i32 -> vector<1x4x2x8x16xf32>
    %c15_i32_11 = arith.constant 15 : i32
    %13 = tpu.dynamic_rotate %1 by %c15_i32_11 dim 4 : vector<1x4x2x8x16xf32>, i32 -> vector<1x4x2x8x16xf32>
    %14 = vector.shape_cast %6 : vector<1x1x1x1x16xi1> to vector<1x1x1x1x16xi1>
    %15 = vector.broadcast %14 : vector<1x1x1x1x16xi1> to vector<1x4x2x8x16xi1>
    %16 = arith.select %15, %12, %13 : vector<1x4x2x8x16xi1>, vector<1x4x2x8x16xf32>
    %17 = arith.mulf %0, %0 : vector<1x4x2x8x16xf32>
    %cst = arith.constant dense<0.000000e+00> : vector<1x2x8x16xf32>
    %18 = vector.multi_reduction <add>, %17, %cst [1] : vector<1x4x2x8x16xf32> to vector<1x2x8x16xf32>
    %19 = vector.shape_cast %18 : vector<1x2x8x16xf32> to vector<1x1x2x8x16xf32>
    %20 = arith.mulf %11, %11 : vector<1x4x2x8x16xf32>
    %cst_12 = arith.constant dense<0.000000e+00> : vector<1x2x8x16xf32>
    %21 = vector.multi_reduction <add>, %20, %cst_12 [1] : vector<1x4x2x8x16xf32> to vector<1x2x8x16xf32>
    %22 = vector.shape_cast %21 : vector<1x2x8x16xf32> to vector<1x1x2x8x16xf32>
    %23 = arith.cmpf ogt, %22, %19 : vector<1x1x2x8x16xf32>
    %24 = vector.shape_cast %23 : vector<1x1x2x8x16xi1> to vector<1x1x2x8x16xi1>
    %25 = vector.broadcast %24 : vector<1x1x2x8x16xi1> to vector<1x4x2x8x16xi1>
    %26 = arith.select %25, %11, %0 : vector<1x4x2x8x16xi1>, vector<1x4x2x8x16xf32>
    %27 = arith.select %23, %22, %19 : vector<1x1x2x8x16xi1>, vector<1x1x2x8x16xf32>
    %28 = arith.mulf %1, %1 : vector<1x4x2x8x16xf32>
    %cst_13 = arith.constant dense<0.000000e+00> : vector<1x2x8x16xf32>
    %29 = vector.multi_reduction <add>, %28, %cst_13 [1] : vector<1x4x2x8x16xf32> to vector<1x2x8x16xf32>
    %30 = vector.shape_cast %29 : vector<1x2x8x16xf32> to vector<1x1x2x8x16xf32>
    %31 = arith.cmpf ogt, %30, %27 : vector<1x1x2x8x16xf32>
    %32 = vector.shape_cast %31 : vector<1x1x2x8x16xi1> to vector<1x1x2x8x16xi1>
    %33 = vector.broadcast %32 : vector<1x1x2x8x16xi1> to vector<1x4x2x8x16xi1>
    %34 = arith.select %33, %1, %26 : vector<1x4x2x8x16xi1>, vector<1x4x2x8x16xf32>
    %35 = arith.select %31, %30, %27 : vector<1x1x2x8x16xi1>, vector<1x1x2x8x16xf32>
    %36 = arith.mulf %16, %16 : vector<1x4x2x8x16xf32>
    %cst_14 = arith.constant dense<0.000000e+00> : vector<1x2x8x16xf32>
    %37 = vector.multi_reduction <add>, %36, %cst_14 [1] : vector<1x4x2x8x16xf32> to vector<1x2x8x16xf32>
    %38 = vector.shape_cast %37 : vector<1x2x8x16xf32> to vector<1x1x2x8x16xf32>
    %39 = arith.cmpf ogt, %38, %35 : vector<1x1x2x8x16xf32>
    %40 = vector.shape_cast %39 : vector<1x1x2x8x16xi1> to vector<1x1x2x8x16xi1>
    %41 = vector.broadcast %40 : vector<1x1x2x8x16xi1> to vector<1x4x2x8x16xi1>
    %42 = arith.select %41, %16, %34 : vector<1x4x2x8x16xi1>, vector<1x4x2x8x16xf32>
    %c0_15 = arith.constant 0 : index
    %c0_16 = arith.constant 0 : index
    %c0_17 = arith.constant 0 : index
    %c0_18 = arith.constant 0 : index
    %c0_19 = arith.constant 0 : index
    %43 = vector.load %arg4[%c0_15, %c0_16, %c0_17, %c0_18, %c0_19] : memref<1x4x2x8x16xf32, #tpu.memory_space<vmem>>, vector<1x4x2x8x16xf32>
    tpu.vector_store %arg4[%c0_15, %c0_16, %c0_17, %c0_18, %c0_19], %42 {strides = array<i32>} : memref<1x4x2x8x16xf32, #tpu.memory_space<vmem>>, vector<1x4x2x8x16xf32>,
    return
  }
  func.func @transform_0(%arg0: i32, %arg1: i32, %arg2: i32) -> (i32, i32, i32, i32, i32) {
    %c0_i32 = arith.constant 0 : i32
    %c0_i32_0 = arith.constant 0 : i32
    %c0_i32_1 = arith.constant 0 : i32
    return %arg0, %c0_i32, %arg1, %arg2, %c0_i32_0 : i32, i32, i32, i32, i32
  }
  func.func @transform_1(%arg0: i32, %arg1: i32, %arg2: i32) -> (i32, i32, i32, i32, i32) {
    %c0_i32 = arith.constant 0 : i32
    %c0_i32_0 = arith.constant 0 : i32
    %c0_i32_1 = arith.constant 0 : i32
    return %arg0, %c0_i32, %arg1, %arg2, %c0_i32_0 : i32, i32, i32, i32, i32
  }
}

</mosaic_0001>

<llo_original>
// kernel: quaternion_max_amp_pool2d.1
$region0: #{quaternion_max_amp_pool2d.1}
  #allocation0 [shape = 'u32[]', space=smem, size = 0x4, offset = 0x4, fixed_abs, tag = 'smem constant byte address 0x4 - core index']
  #allocation1 [shape = 'u32[144,128]{1,0:T(1,128)}', space=vmem, size = 0x12000, scoped, tag = 'internal scratch']
  %s0 = inlined_call_operand.hbm [shape: f32[2,4,2,16,16], index: 0, kind: input, shape index: {}]
  %s1 = inlined_call_operand.vmem [shape: f32[2,4,2,8,16], index: 1, kind: output, shape index: {}]
  %s2 = sld [smem:[#allocation0]]
  $region41: #{quaternion_max_amp_pool2d.1} parent=0
    _
  %s4 = ssub.s32 1, %s2
  %s5 = scalar_select 0, %s4, %s2
  $region1: #{quaternion_max_amp_pool2d.1} parent=0
    #allocation2 [shape = 'u8[131072]{0}', space=vmem, size = 0x20000, scoped, tag = 'input window, operand 0']
    #allocation3 [shape = 's32[2]{0}', space=sflag, size = 0x8, scoped, tag = 'scoped memory for quaternion_max_amp_pool2d.1']
    %6 = vsyncpa [#allocation3], 0
    %s7 = scalar_lea.sflag [#allocation3], 1
    %8 = vsyncpa %s7, 0
    loop: start=0, step=1, limit=4
    $region2: #{quaternion_max_amp_pool2d.1} parent=1 // loop_pre_header
      _
    $region3: #{quaternion_max_amp_pool2d.1} parent=1 // loop_header
      %s10 = sphi 0, %s14
      %p11 = scmp.ge.s32.totalorder %s10, 4
      %s17 = sphi 0, %s36
      %s18 = sphi 0, %s32
      %s19 = sphi 0, %s28
      %s20 = sphi 0, %s17
      %s21 = sphi 0, %s18
      %s22 = sphi 0, %s19
      %s23 = sphi 0, %s20
      %s24 = sphi 0, %s21
      %s25 = sphi 0, %s22
      %s43 = sphi 0, %s45
      %s46 = sphi 0, %s43
      %s47 = sphi 0, %s46
      %s63 = sphi 0, %s47
      %s73 = sphi 0, %s75
      %s76 = sphi 0, %s73
      %s77 = sphi 0, %s76
      %s93 = sphi 0, %s77
    $region4: #{quaternion_max_amp_pool2d.1} parent=1 // loop_header_branch
      %13 = sbr.rel (%p11) target = $region8
    $region5: #{quaternion_max_amp_pool2d.1} parent=1 // loop_body
      %s15 = ssub.s32 %s10, 1
      %s16 = ssub.s32 %s10, 2
      %s26 = sadd.s32 1, %s19
      %p27 = scmp.ge.s32.totalorder %s26, 1
      %s28 = scalar_select %p27, 0, %s26
      %s29 = sadd.s32 1, %s18
      %s30 = scalar_select %p27, %s29, %s18
      %p31 = scmp.ge.s32.totalorder %s30, 1
      %s32 = scalar_select %p31, 0, %s30
      %s33 = sadd.s32 1, %s17
      %s34 = scalar_select %p31, %s33, %s17
      %p35 = scmp.ge.s32.totalorder %s34, 2
      %s36 = scalar_select %p35, 0, %s34
      %s37 = ssub.s32 %s17, %s36
      %s38 = ssub.s32 %s18, %s32
      %s39 = sor.u32 %s37, %s38
      %s40 = ssub.s32 %s19, %s28
      %s41 = sor.u32 %s39, %s40
      %p42 = scmp.eq.s32.totalorder %s41, 0
      %s44 = sadd.s32 %s43, 1
      %s45 = scalar_select %p42, %s43, %s44
      %p48 = pneg %p42
      %p49 = scmp.eq.s32.totalorder %s10, 1
      %p50 = por %p48, %p49
      %p51 = scmp.ne.s32.totalorder %s43, %s46
      %p52 = scmp.eq.s32.totalorder %s10, 0
      %p53 = por %p51, %p52
      %p54 = scmp.ne.s32.totalorder %s43, %s46
      %p55 = scmp.eq.s32.totalorder %s15, 1
      %p56 = por %p54, %p55
      %p57 = scmp.ne.s32.totalorder %s46, %s47
      %p58 = scmp.eq.s32.totalorder %s15, 0
      %p59 = por %p57, %p58
      %p60 = scmp.ne.s32.totalorder %s46, %s47
      %p61 = scmp.eq.s32.totalorder %s16, 1
      %p62 = por %p60, %p61
      %p64 = scmp.ne.s32.totalorder %s47, %s63
      %p65 = scmp.eq.s32.totalorder %s16, 0
      %p66 = por %p64, %p65
      %s67 = ssub.s32 %s17, %s36
      %s68 = ssub.s32 %s18, %s32
      %s69 = sor.u32 %s67, %s68
      %s70 = ssub.s32 %s19, %s28
      %s71 = sor.u32 %s69, %s70
      %p72 = scmp.eq.s32.totalorder %s71, 0
      %s74 = sadd.s32 %s73, 1
      %s75 = scalar_select %p72, %s73, %s74
      %p78 = pneg %p72
      %p79 = scmp.eq.s32.totalorder %s10, 1
      %p80 = por %p78, %p79
      %p81 = scmp.ne.s32.totalorder %s73, %s76
      %p82 = scmp.eq.s32.totalorder %s10, 0
      %p83 = por %p81, %p82
      %p84 = scmp.ne.s32.totalorder %s73, %s76
      %p85 = scmp.eq.s32.totalorder %s15, 1
      %p86 = por %p84, %p85
      %p87 = scmp.ne.s32.totalorder %s76, %s77
      %p88 = scmp.eq.s32.totalorder %s15, 0
      %p89 = por %p87, %p88
      %p90 = scmp.ne.s32.totalorder %s76, %s77
      %p91 = scmp.eq.s32.totalorder %s16, 1
      %p92 = por %p90, %p91
      %p94 = scmp.ne.s32.totalorder %s77, %s93
      %p95 = scmp.eq.s32.totalorder %s16, 0
      %p96 = por %p94, %p95
      %p97 = scmp.le.s32.totalorder 1, %s10
      %p98 = scmp.lt.s32.totalorder %s10, 3
      %p99 = pnand %p97, %p98
      %p100 = pneg %p99
      // Predicated region
      $region9: #{quaternion_max_amp_pool2d.1} parent=5 // pred_check
        _
      $region10: #{quaternion_max_amp_pool2d.1} parent=5 // pred_check_branch
        %102 = sbr.rel (%p99) target = $region12
      $region11: #{quaternion_max_amp_pool2d.1} parent=5 // pred_region
        %s103 = ssub.s32 %s10, 1
      $region12: #{quaternion_max_amp_pool2d.1} parent=5 // pred_fallthru
        _
      %p104 = scmp.lt.s32.totalorder %s10, 2
      // Predicated region
      $region13: #{quaternion_max_amp_pool2d.1} parent=5 // pred_check
        %p105 = pneg %p104
      $region14: #{quaternion_max_amp_pool2d.1} parent=5 // pred_check_branch
        %107 = sbr.rel (%p105) target = $region16
      $region15: #{quaternion_max_amp_pool2d.1} parent=5 // pred_region
        // Predicated region
        $region17: #{quaternion_max_amp_pool2d.1} parent=15 // pred_check
          %p108 = pneg %p53
        $region18: #{quaternion_max_amp_pool2d.1} parent=15 // pred_check_branch
          %110 = sbr.rel (%p108) target = $region20
        $region19: #{quaternion_max_amp_pool2d.1} parent=15 // pred_region
          %s111 = sand.u32 %s43, 1
          %s112 = scalar_lea.sflag [#allocation3], %s111
          %s113 = sand.u32 %s43, 1
          %s114 = smul.addr %s113, 128
          %s115 = scalar_lea.vmem [#allocation2], %s114
          %s116 = smul.u32 2, %s18
          %s117 = smul.u32 2, %s19
          %s119 = ssub.s32 2048, 2048
          %120 = vsyncadd %s112, %s119
          %s121 = smul.addr %s116, 2
          %s122 = sadd.s32 %s117, %s121
          %s123 = smul.addr %s17, 16
          %s124 = sadd.s32 %s122, %s123
          %s125 = smul.addr %s124, 128
          %s126 = scalar_lea.hbm %s0, %s125
          %s127 = sshll.u32 %s115, 4
          %s128 = int_to_ptr.vmem [resolvable:$true] %s127
          %133 = dma.hbm_to_vmem [thread:$0]  %s126, 2048, %s128, %s112, 128, 128, 8
        $region20: #{quaternion_max_amp_pool2d.1} parent=15 // pred_fallthru
          _
      $region16: #{quaternion_max_amp_pool2d.1} parent=5 // pred_fallthru
        _
      %p134 = scmp.le.s32.totalorder 1, %s10
      %p135 = scmp.lt.s32.totalorder %s10, 3
      %p136 = pnand %p134, %p135
      %p137 = pneg %p136
      // Predicated region
      $region21: #{quaternion_max_amp_pool2d.1} parent=5 // pred_check
        _
      $region22: #{quaternion_max_amp_pool2d.1} parent=5 // pred_check_branch
        %139 = sbr.rel (%p136) target = $region24
      $region23: #{quaternion_max_amp_pool2d.1} parent=5 // pred_region
        %s140 = ssub.s32 %s10, 1
        %s141 = sand.u32 %s46, 1
        %s142 = scalar_lea.sflag [#allocation3], %s141
        %s143 = sand.u32 %s46, 1
        %s144 = smul.addr %s143, 128
        %s145 = scalar_lea.vmem [#allocation2], %s144
        // Predicated region
        $region25: #{quaternion_max_amp_pool2d.1} parent=23 // pred_check
          %p146 = pneg %p59
        $region26: #{quaternion_max_amp_pool2d.1} parent=23 // pred_check_branch
          %148 = sbr.rel (%p146) target = $region28
        $region27: #{quaternion_max_amp_pool2d.1} parent=23 // pred_region
          %149 = dma.done %s142, 2048
        $region28: #{quaternion_max_amp_pool2d.1} parent=23 // pred_fallthru
          _
        %s150 = sand.u32 %s46, 1
        %s151 = scalar_lea.sflag [#allocation3], %s150
        %s152 = sand.u32 %s46, 1
        %s153 = smul.addr %s152, 128
        %s154 = scalar_lea.vmem [#allocation2], %s153
        %p155 = pneg %p59
        %p156 = pneg %p56
        %p157 = pneg %p89
        %p158 = pneg %p86
        %s159 = smul.u32 2, %s21
        %p160 = scmp.lt.s32.totalorder %s20, 1
        %s161 = scalar_select %p160, %s20, 1
        %p162 = scmp.lt.s32.totalorder %s159, 1
        %s163 = scalar_select %p162, %s159, 1
        %p164 = scmp.lt.s32.totalorder %s22, 0
        %s165 = scalar_select %p164, %s22, 0
        %s166 = sadd.s32 %s165, %s163
        %s167 = smul.addr %s161, 8
        %s168 = sadd.s32 %s166, %s167
        %s169 = smul.addr %s168, 8
        %s170 = scalar_lea.vmem %s1, %s169
        %s171 = smul.u32 2, %s21
        %s172 = smul.u32 2, %s22
        %s173 = smul.u32 2, %s21
        %p174 = scmp.lt.s32.totalorder %s20, 1
        %s175 = scalar_select %p174, %s20, 1
        %p176 = scmp.lt.s32.totalorder %s173, 1
        %s177 = scalar_select %p176, %s173, 1
        %p178 = scmp.lt.s32.totalorder %s22, 0
        %s179 = scalar_select %p178, %s22, 0
        %s180 = sadd.s32 %s179, %s177
        %s181 = smul.addr %s175, 8
        %s182 = sadd.s32 %s180, %s181
        %s183 = smul.addr %s182, 8
        %s184 = scalar_lea.vmem %s1, %s183
        %s185 = smul.u32 2, %s21
        %v186 = vld [vmem:[%s145] ss:$2 sm:$0xff]
        %s187 = scalar_lea.vmem %s145, 16 [#allocation2]
        %v188 = vld [vmem:[%s187] ss:$2 sm:$0xff]
        %s189 = scalar_lea.vmem %s145, 32 [#allocation2]
        %v190 = vld [vmem:[%s189] ss:$2 sm:$0xff]
        %s191 = scalar_lea.vmem %s145, 48 [#allocation2]
        %v192 = vld [vmem:[%s191] ss:$2 sm:$0xff]
        %s193 = scalar_lea.vmem %s145, 64 [#allocation2]
        %v194 = vld [vmem:[%s193] ss:$2 sm:$0xff]
        %s195 = scalar_lea.vmem %s145, 80 [#allocation2]
        %v196 = vld [vmem:[%s195] ss:$2 sm:$0xff]
        %s197 = scalar_lea.vmem %s145, 96 [#allocation2]
        %v198 = vld [vmem:[%s197] ss:$2 sm:$0xff]
        %s199 = scalar_lea.vmem %s145, 112 [#allocation2]
        %v200 = vld [vmem:[%s199] ss:$2 sm:$0xff]
        %s201 = scalar_lea.vmem %s145, 1 [#allocation2]
        %v202 = vld [vmem:[%s201] ss:$2 sm:$0xff]
        %s203 = scalar_lea.vmem %s145, 17 [#allocation2]
        %v204 = vld [vmem:[%s203] ss:$2 sm:$0xff]
        %s205 = scalar_lea.vmem %s145, 33 [#allocation2]
        %v206 = vld [vmem:[%s205] ss:$2 sm:$0xff]
        %s207 = scalar_lea.vmem %s145, 49 [#allocation2]
        %v208 = vld [vmem:[%s207] ss:$2 sm:$0xff]
        %s209 = scalar_lea.vmem %s145, 65 [#allocation2]
        %v210 = vld [vmem:[%s209] ss:$2 sm:$0xff]
        %s211 = scalar_lea.vmem %s145, 81 [#allocation2]
        %v212 = vld [vmem:[%s211] ss:$2 sm:$0xff]
        %s213 = scalar_lea.vmem %s145, 97 [#allocation2]
        %v214 = vld [vmem:[%s213] ss:$2 sm:$0xff]
        %s215 = scalar_lea.vmem %s145, 113 [#allocation2]
        %v216 = vld [vmem:[%s215] ss:$2 sm:$0xff]
        %v217 = vlaneseq
        %v218 = vand.u32 %v217, 127
        %vm219 = vcmask 1047680
        %220 = vrot.lane.b32.xlu0 %v218, 16
        %v221 = vpop.permute.xlu0 %220
        %v222 = vsel %vm219, %v221, %v218
        %223 = vrot.lane.b32.xlu0 %v222, 16
        %v224 = vpop.permute.xlu0 %223
        %v225 = vsel %vm219, %v224, %v218
        %v226 = vadd.s32 %v218, 1
        %227 = vrot.lane.b32.xlu0 %v226, 15
        %v228 = vpop.permute.xlu0 %227
        %vm229 = vcmp.eq.s32.totalorder %v225, %v228
        %230 = vrot.lane.b32.xlu0 %v186, 16
        %v231 = vpop.permute.xlu0 %230
        %v232 = vsel %vm219, %v231, %v186
        %233 = vrot.lane.b32.xlu0 %v188, 16
        %v234 = vpop.permute.xlu0 %233
        %v235 = vsel %vm219, %v234, %v188
        %236 = vrot.lane.b32.xlu0 %v190, 16
        %v237 = vpop.permute.xlu0 %236
        %v238 = vsel %vm219, %v237, %v190
        %239 = vrot.lane.b32.xlu0 %v192, 16
        %v240 = vpop.permute.xlu0 %239
        %v241 = vsel %vm219, %v240, %v192
        %242 = vrot.lane.b32.xlu0 %v194, 16
        %v243 = vpop.permute.xlu0 %242
        %v244 = vsel %vm219, %v243, %v194
        %245 = vrot.lane.b32.xlu0 %v196, 16
        %v246 = vpop.permute.xlu0 %245
        %v247 = vsel %vm219, %v246, %v196
        %248 = vrot.lane.b32.xlu0 %v198, 16
        %v249 = vpop.permute.xlu0 %248
        %v250 = vsel %vm219, %v249, %v198
        %251 = vrot.lane.b32.xlu0 %v200, 16
        %v252 = vpop.permute.xlu0 %251
        %v253 = vsel %vm219, %v252, %v200
        %254 = vrot.lane.b32.xlu0 %v232, 16
        %v255 = vpop.permute.xlu0 %254
        %256 = vrot.lane.b32.xlu0 %v235, 16
        %v257 = vpop.permute.xlu0 %256
        %258 = vrot.lane.b32.xlu0 %v238, 16
        %v259 = vpop.permute.xlu0 %258
        %260 = vrot.lane.b32.xlu0 %v241, 16
        %v261 = vpop.permute.xlu0 %260
        %262 = vrot.lane.b32.xlu0 %v244, 16
        %v263 = vpop.permute.xlu0 %262
        %264 = vrot.lane.b32.xlu0 %v247, 16
        %v265 = vpop.permute.xlu0 %264
        %266 = vrot.lane.b32.xlu0 %v250, 16
        %v267 = vpop.permute.xlu0 %266
        %268 = vrot.lane.b32.xlu0 %v253, 16
        %v269 = vpop.permute.xlu0 %268
        %v270 = vsel %vm219, %v255, %v186
        %v271 = vsel %vm219, %v257, %v188
        %v272 = vsel %vm219, %v259, %v190
        %v273 = vsel %vm219, %v261, %v192
        %v274 = vsel %vm219, %v263, %v194
        %v275 = vsel %vm219, %v265, %v196
        %v276 = vsel %vm219, %v267, %v198
        %v277 = vsel %vm219, %v269, %v200
        %v278 = vsel %vm229, 1, 0
        %v279 = vlaneseq
        %v280 = vshrl.u32 %v279, 7
        %v281 = vsub.s32 0, %v280
        %v282 = vrot.slane %v278, %v281
        %vm283 = vcmp.eq.s32.totalorder %v282, 1
        %292 = vrot.lane.b32.xlu0 %v270, 14
        %v293 = vpop.permute.xlu0 %292
        %294 = vrot.lane.b32.xlu0 %v271, 14
        %v295 = vpop.permute.xlu0 %294
        %296 = vrot.lane.b32.xlu0 %v272, 14
        %v297 = vpop.permute.xlu0 %296
        %298 = vrot.lane.b32.xlu0 %v273, 14
        %v299 = vpop.permute.xlu0 %298
        %300 = vrot.lane.b32.xlu0 %v274, 14
        %v301 = vpop.permute.xlu0 %300
        %302 = vrot.lane.b32.xlu0 %v275, 14
        %v303 = vpop.permute.xlu0 %302
        %304 = vrot.lane.b32.xlu0 %v276, 14
        %v305 = vpop.permute.xlu0 %304
        %306 = vrot.lane.b32.xlu0 %v277, 14
        %v307 = vpop.permute.xlu0 %306
        %v316 = vsel %vm283, %v270, %v293
        %v317 = vsel %vm283, %v271, %v295
        %v318 = vsel %vm283, %v272, %v297
        %v319 = vsel %vm283, %v273, %v299
        %v320 = vsel %vm283, %v274, %v301
        %v321 = vsel %vm283, %v275, %v303
        %v322 = vsel %vm283, %v276, %v305
        %v323 = vsel %vm283, %v277, %v307
        %324 = vrot.lane.b32.xlu0 %v202, 16
        %v325 = vpop.permute.xlu0 %324
        %v326 = vsel %vm219, %v325, %v202
        %327 = vrot.lane.b32.xlu0 %v204, 16
        %v328 = vpop.permute.xlu0 %327
        %v329 = vsel %vm219, %v328, %v204
        %330 = vrot.lane.b32.xlu0 %v206, 16
        %v331 = vpop.permute.xlu0 %330
        %v332 = vsel %vm219, %v331, %v206
        %333 = vrot.lane.b32.xlu0 %v208, 16
        %v334 = vpop.permute.xlu0 %333
        %v335 = vsel %vm219, %v334, %v208
        %336 = vrot.lane.b32.xlu0 %v210, 16
        %v337 = vpop.permute.xlu0 %336
        %v338 = vsel %vm219, %v337, %v210
        %339 = vrot.lane.b32.xlu0 %v212, 16
        %v340 = vpop.permute.xlu0 %339
        %v341 = vsel %vm219, %v340, %v212
        %342 = vrot.lane.b32.xlu0 %v214, 16
        %v343 = vpop.permute.xlu0 %342
        %v344 = vsel %vm219, %v343, %v214
        %345 = vrot.lane.b32.xlu0 %v216, 16
        %v346 = vpop.permute.xlu0 %345
        %v347 = vsel %vm219, %v346, %v216
        %348 = vrot.lane.b32.xlu0 %v326, 16
        %v349 = vpop.permute.xlu0 %348
        %350 = vrot.lane.b32.xlu0 %v329, 16
        %v351 = vpop.permute.xlu0 %350
        %352 = vrot.lane.b32.xlu0 %v332, 16
        %v353 = vpop.permute.xlu0 %352
        %354 = vrot.lane.b32.xlu0 %v335, 16
        %v355 = vpop.permute.xlu0 %354
        %356 = vrot.lane.b32.xlu0 %v338, 16
        %v357 = vpop.permute.xlu0 %356
        %358 = vrot.lane.b32.xlu0 %v341, 16
        %v359 = vpop.permute.xlu0 %358
        %360 = vrot.lane.b32.xlu0 %v344, 16
        %v361 = vpop.permute.xlu0 %360
        %362 = vrot.lane.b32.xlu0 %v347, 16
        %v363 = vpop.permute.xlu0 %362
        %v364 = vsel %vm219, %v349, %v202
        %v365 = vsel %vm219, %v351, %v204
        %v366 = vsel %vm219, %v353, %v206
        %v367 = vsel %vm219, %v355, %v208
        %v368 = vsel %vm219, %v357, %v210
        %v369 = vsel %vm219, %v359, %v212
        %v370 = vsel %vm219, %v361, %v214
        %v371 = vsel %vm219, %v363, %v216
        %380 = vrot.lane.b32.xlu0 %v364, 14
        %v381 = vpop.permute.xlu0 %380
        %382 = vrot.lane.b32.xlu0 %v365, 14
        %v383 = vpop.permute.xlu0 %382
        %384 = vrot.lane.b32.xlu0 %v366, 14
        %v385 = vpop.permute.xlu0 %384
        %386 = vrot.lane.b32.xlu0 %v367, 14
        %v387 = vpop.permute.xlu0 %386
        %388 = vrot.lane.b32.xlu0 %v368, 14
        %v389 = vpop.permute.xlu0 %388
        %390 = vrot.lane.b32.xlu0 %v369, 14
        %v391 = vpop.permute.xlu0 %390
        %392 = vrot.lane.b32.xlu0 %v370, 14
        %v393 = vpop.permute.xlu0 %392
        %394 = vrot.lane.b32.xlu0 %v371, 14
        %v395 = vpop.permute.xlu0 %394
        %v404 = vsel %vm283, %v364, %v381
        %v405 = vsel %vm283, %v365, %v383
        %v406 = vsel %vm283, %v366, %v385
        %v407 = vsel %vm283, %v367, %v387
        %v408 = vsel %vm283, %v368, %v389
        %v409 = vsel %vm283, %v369, %v391
        %v410 = vsel %vm283, %v370, %v393
        %v411 = vsel %vm283, %v371, %v395
        %v412 = vmul.f32 %v186, %v186
        %v413 = vmul.f32 %v188, %v188
        %v414 = vmul.f32 %v190, %v190
        %v415 = vmul.f32 %v192, %v192
        %v416 = vmul.f32 %v194, %v194
        %v417 = vmul.f32 %v196, %v196
        %v418 = vmul.f32 %v198, %v198
        %v419 = vmul.f32 %v200, %v200
        %vm420 = vcmask 130048
        %v421 = vsel %vm420, %v412, 0.0
        %v422 = vsel %vm420, %v414, 0.0
        %v423 = vadd.f32 %v421, %v422
        %v424 = vsel %vm420, %v416, 0.0
        %v425 = vadd.f32 %v423, %v424
        %v426 = vsel %vm420, %v418, 0.0
        %v427 = vadd.f32 %v425, %v426
        %v428 = vsel %vm420, %v413, 0.0
        %v429 = vsel %vm420, %v415, 0.0
        %v430 = vadd.f32 %v428, %v429
        %v431 = vsel %vm420, %v417, 0.0
        %v432 = vadd.f32 %v430, %v431
        %v433 = vsel %vm420, %v419, 0.0
        %v434 = vadd.f32 %v432, %v433
        %v435 = vmul.f32 %v316, %v316
        %v436 = vmul.f32 %v317, %v317
        %v437 = vmul.f32 %v318, %v318
        %v438 = vmul.f32 %v319, %v319
        %v439 = vmul.f32 %v320, %v320
        %v440 = vmul.f32 %v321, %v321
        %v441 = vmul.f32 %v322, %v322
        %v442 = vmul.f32 %v323, %v323
        %vm443 = vcmask 253048
        %v444 = vsel %vm443, %v435, 0.0
        %v445 = vsel %vm443, %v437, 0.0
        %v446 = vadd.f32 %v444, %v445
        %v447 = vsel %vm443, %v439, 0.0
        %v448 = vadd.f32 %v446, %v447
        %v449 = vsel %vm443, %v441, 0.0
        %v450 = vadd.f32 %v448, %v449
        %v451 = vsel %vm443, %v436, 0.0
        %v452 = vsel %vm443, %v438, 0.0
        %v453 = vadd.f32 %v451, %v452
        %v454 = vsel %vm443, %v440, 0.0
        %v455 = vadd.f32 %v453, %v454
        %v456 = vsel %vm443, %v442, 0.0
        %v457 = vadd.f32 %v455, %v456
        %460 = vrot.lane.b32.xlu0 %v427, 15
        %v461 = vpop.permute.xlu0 %460
        %462 = vrot.lane.b32.xlu0 %v434, 15
        %v463 = vpop.permute.xlu0 %462
        %vm466 = vcmp.gt.f32.partialorder %v450, %v461
        %vm467 = vcmp.gt.f32.partialorder %v457, %v463
        %v468 = vsel %vm466, 1, 0
        %v469 = vsel %vm467, 1, 0
        %vm470 = vcmp.eq.s32.totalorder %v468, 1
        %vm471 = vcmp.eq.s32.totalorder %v469, 1
        %480 = vrot.lane.b32.xlu0 %v186, 15
        %v481 = vpop.permute.xlu0 %480
        %482 = vrot.lane.b32.xlu0 %v188, 15
        %v483 = vpop.permute.xlu0 %482
        %484 = vrot.lane.b32.xlu0 %v190, 15
        %v485 = vpop.permute.xlu0 %484
        %486 = vrot.lane.b32.xlu0 %v192, 15
        %v487 = vpop.permute.xlu0 %486
        %488 = vrot.lane.b32.xlu0 %v194, 15
        %v489 = vpop.permute.xlu0 %488
        %490 = vrot.lane.b32.xlu0 %v196, 15
        %v491 = vpop.permute.xlu0 %490
        %492 = vrot.lane.b32.xlu0 %v198, 15
        %v493 = vpop.permute.xlu0 %492
        %494 = vrot.lane.b32.xlu0 %v200, 15
        %v495 = vpop.permute.xlu0 %494
        %v504 = vsel %vm470, %v316, %v481
        %v505 = vsel %vm471, %v317, %v483
        %v506 = vsel %vm470, %v318, %v485
        %v507 = vsel %vm471, %v319, %v487
        %v508 = vsel %vm470, %v320, %v489
        %v509 = vsel %vm471, %v321, %v491
        %v510 = vsel %vm470, %v322, %v493
        %v511 = vsel %vm471, %v323, %v495
        %v512 = vsel %vm466, %v450, %v461
        %v513 = vsel %vm467, %v457, %v463
        %v514 = vmul.f32 %v202, %v202
        %v515 = vmul.f32 %v204, %v204
        %v516 = vmul.f32 %v206, %v206
        %v517 = vmul.f32 %v208, %v208
        %v518 = vmul.f32 %v210, %v210
        %v519 = vmul.f32 %v212, %v212
        %v520 = vmul.f32 %v214, %v214
        %v521 = vmul.f32 %v216, %v216
        %v522 = vsel %vm420, %v514, 0.0
        %v523 = vsel %vm420, %v516, 0.0
        %v524 = vadd.f32 %v522, %v523
        %v525 = vsel %vm420, %v518, 0.0
        %v526 = vadd.f32 %v524, %v525
        %v527 = vsel %vm420, %v520, 0.0
        %v528 = vadd.f32 %v526, %v527
        %v529 = vsel %vm420, %v515, 0.0
        %v530 = vsel %vm420, %v517, 0.0
        %v531 = vadd.f32 %v529, %v530
        %v532 = vsel %vm420, %v519, 0.0
        %v533 = vadd.f32 %v531, %v532
        %v534 = vsel %vm420, %v521, 0.0
        %v535 = vadd.f32 %v533, %v534
        %538 = vrot.lane.b32.xlu0 %v512, 113
        %v539 = vpop.permute.xlu0 %538
        %540 = vrot.lane.b32.xlu0 %v513, 113
        %v541 = vpop.permute.xlu0 %540
        %vm544 = vcmp.gt.f32.partialorder %v528, %v539
        %vm545 = vcmp.gt.f32.partialorder %v535, %v541
        %v546 = vsel %vm544, 1, 0
        %v547 = vsel %vm545, 1, 0
        %vm548 = vcmp.eq.s32.totalorder %v546, 1
        %vm549 = vcmp.eq.s32.totalorder %v547, 1
        %558 = vrot.lane.b32.xlu0 %v504, 113
        %v559 = vpop.permute.xlu0 %558
        %560 = vrot.lane.b32.xlu0 %v505, 113
        %v561 = vpop.permute.xlu0 %560
        %562 = vrot.lane.b32.xlu0 %v506, 113
        %v563 = vpop.permute.xlu0 %562
        %564 = vrot.lane.b32.xlu0 %v507, 113
        %v565 = vpop.permute.xlu0 %564
        %566 = vrot.lane.b32.xlu0 %v508, 113
        %v567 = vpop.permute.xlu0 %566
        %568 = vrot.lane.b32.xlu0 %v509, 113
        %v569 = vpop.permute.xlu0 %568
        %570 = vrot.lane.b32.xlu0 %v510, 113
        %v571 = vpop.permute.xlu0 %570
        %572 = vrot.lane.b32.xlu0 %v511, 113
        %v573 = vpop.permute.xlu0 %572
        %v582 = vsel %vm548, %v202, %v559
        %v583 = vsel %vm549, %v204, %v561
        %v584 = vsel %vm548, %v206, %v563
        %v585 = vsel %vm549, %v208, %v565
        %v586 = vsel %vm548, %v210, %v567
        %v587 = vsel %vm549, %v212, %v569
        %v588 = vsel %vm548, %v214, %v571
        %v589 = vsel %vm549, %v216, %v573
        %v590 = vsel %vm544, %v528, %v539
        %v591 = vsel %vm545, %v535, %v541
        %v592 = vmul.f32 %v404, %v404
        %v593 = vmul.f32 %v405, %v405
        %v594 = vmul.f32 %v406, %v406
        %v595 = vmul.f32 %v407, %v407
        %v596 = vmul.f32 %v408, %v408
        %v597 = vmul.f32 %v409, %v409
        %v598 = vmul.f32 %v410, %v410
        %v599 = vmul.f32 %v411, %v411
        %v600 = vsel %vm443, %v592, 0.0
        %v601 = vsel %vm443, %v594, 0.0
        %v602 = vadd.f32 %v600, %v601
        %v603 = vsel %vm443, %v596, 0.0
        %v604 = vadd.f32 %v602, %v603
        %v605 = vsel %vm443, %v598, 0.0
        %v606 = vadd.f32 %v604, %v605
        %v607 = vsel %vm443, %v593, 0.0
        %v608 = vsel %vm443, %v595, 0.0
        %v609 = vadd.f32 %v607, %v608
        %v610 = vsel %vm443, %v597, 0.0
        %v611 = vadd.f32 %v609, %v610
        %v612 = vsel %vm443, %v599, 0.0
        %v613 = vadd.f32 %v611, %v612
        %616 = vrot.lane.b32.xlu0 %v590, 15
        %v617 = vpop.permute.xlu0 %616
        %618 = vrot.lane.b32.xlu0 %v591, 15
        %v619 = vpop.permute.xlu0 %618
        %vm622 = vcmp.gt.f32.partialorder %v606, %v617
        %vm623 = vcmp.gt.f32.partialorder %v613, %v619
        %v624 = vsel %vm622, 1, 0
        %v625 = vsel %vm623, 1, 0
        %vm626 = vcmp.eq.s32.totalorder %v624, 1
        %vm627 = vcmp.eq.s32.totalorder %v625, 1
        %636 = vrot.lane.b32.xlu0 %v582, 15
        %v637 = vpop.permute.xlu0 %636
        %638 = vrot.lane.b32.xlu0 %v583, 15
        %v639 = vpop.permute.xlu0 %638
        %640 = vrot.lane.b32.xlu0 %v584, 15
        %v641 = vpop.permute.xlu0 %640
        %642 = vrot.lane.b32.xlu0 %v585, 15
        %v643 = vpop.permute.xlu0 %642
        %644 = vrot.lane.b32.xlu0 %v586, 15
        %v645 = vpop.permute.xlu0 %644
        %646 = vrot.lane.b32.xlu0 %v587, 15
        %v647 = vpop.permute.xlu0 %646
        %648 = vrot.lane.b32.xlu0 %v588, 15
        %v649 = vpop.permute.xlu0 %648
        %650 = vrot.lane.b32.xlu0 %v589, 15
        %v651 = vpop.permute.xlu0 %650
        %v660 = vsel %vm626, %v404, %v637
        %v661 = vsel %vm627, %v405, %v639
        %v662 = vsel %vm626, %v406, %v641
        %v663 = vsel %vm627, %v407, %v643
        %v664 = vsel %vm626, %v408, %v645
        %v665 = vsel %vm627, %v409, %v647
        %v666 = vsel %vm626, %v410, %v649
        %v667 = vsel %vm627, %v411, %v651
        %676 = vrot.lane.b32.xlu0 %v660, 113
        %v677 = vpop.permute.xlu0 %676
        %678 = vrot.lane.b32.xlu0 %v661, 113
        %v679 = vpop.permute.xlu0 %678
        %680 = vrot.lane.b32.xlu0 %v662, 113
        %v681 = vpop.permute.xlu0 %680
        %682 = vrot.lane.b32.xlu0 %v663, 113
        %v683 = vpop.permute.xlu0 %682
        %684 = vrot.lane.b32.xlu0 %v664, 113
        %v685 = vpop.permute.xlu0 %684
        %686 = vrot.lane.b32.xlu0 %v665, 113
        %v687 = vpop.permute.xlu0 %686
        %688 = vrot.lane.b32.xlu0 %v666, 113
        %v689 = vpop.permute.xlu0 %688
        %690 = vrot.lane.b32.xlu0 %v667, 113
        %v691 = vpop.permute.xlu0 %690
        %700 = vst.msk [vmem:[%s184] sm:$0xff] %vm420, %v677
        %701 = vst.msk [vmem:[%s184 + $0x8] sm:$0xff] %vm420, %v679
        %702 = vst.msk [vmem:[%s184 + $0x10] sm:$0xff] %vm420, %v681
        %703 = vst.msk [vmem:[%s184 + $0x18] sm:$0xff] %vm420, %v683
        %704 = vst.msk [vmem:[%s184 + $0x20] sm:$0xff] %vm420, %v685
        %705 = vst.msk [vmem:[%s184 + $0x28] sm:$0xff] %vm420, %v687
        %706 = vst.msk [vmem:[%s184 + $0x30] sm:$0xff] %vm420, %v689
        %707 = vst.msk [vmem:[%s184 + $0x38] sm:$0xff] %vm420, %v691
        %s708 = smul.u32 2, %s21
        %p709 = scmp.lt.s32.totalorder %s20, 1
        %s710 = scalar_select %p709, %s20, 1
        %p711 = scmp.lt.s32.totalorder %s708, 1
        %s712 = scalar_select %p711, %s708, 1
        %p713 = scmp.lt.s32.totalorder %s22, 0
        %s714 = scalar_select %p713, %s22, 0
        %s715 = sadd.s32 %s714, %s712
        %s716 = smul.addr %s710, 8
        %s717 = sadd.s32 %s715, %s716
        %s718 = smul.addr %s717, 8
        %s719 = scalar_lea.vmem %s1, %s718
        // Predicated region
        $region29: #{quaternion_max_amp_pool2d.1} parent=23 // pred_check
          %p720 = pneg %p86
        $region30: #{quaternion_max_amp_pool2d.1} parent=23 // pred_check_branch
          %722 = sbr.rel (%p720) target = $region32
        $region31: #{quaternion_max_amp_pool2d.1} parent=23 // pred_region
          %s723 = smul.u32 2, %s21
        $region32: #{quaternion_max_amp_pool2d.1} parent=23 // pred_fallthru
          _
      $region24: #{quaternion_max_amp_pool2d.1} parent=5 // pred_fallthru
        _
      %p724 = scmp.le.s32.totalorder 2, %s10
      // Predicated region
      $region33: #{quaternion_max_amp_pool2d.1} parent=5 // pred_check
        %p725 = pneg %p724
      $region34: #{quaternion_max_amp_pool2d.1} parent=5 // pred_check_branch
        %727 = sbr.rel (%p725) target = $region36
      $region35: #{quaternion_max_amp_pool2d.1} parent=5 // pred_region
        %s728 = ssub.s32 %s10, 2
        // Predicated region
        $region37: #{quaternion_max_amp_pool2d.1} parent=35 // pred_check
          %p729 = pneg %p92
        $region38: #{quaternion_max_amp_pool2d.1} parent=35 // pred_check_branch
          %731 = sbr.rel (%p729) target = $region40
        $region39: #{quaternion_max_amp_pool2d.1} parent=35 // pred_region
          %s732 = smul.u32 2, %s24
          %p733 = scmp.lt.s32.totalorder %s23, 1
          %s734 = scalar_select %p733, %s23, 1
          %p735 = scmp.lt.s32.totalorder %s732, 1
          %s736 = scalar_select %p735, %s732, 1
          %p737 = scmp.lt.s32.totalorder %s25, 0
          %s738 = scalar_select %p737, %s25, 0
          %s739 = sadd.s32 %s738, %s736
          %s740 = smul.addr %s734, 8
          %s741 = sadd.s32 %s739, %s740
          %s742 = smul.addr %s741, 8
          %s743 = scalar_lea.vmem %s1, %s742
        $region40: #{quaternion_max_amp_pool2d.1} parent=35 // pred_fallthru
          _
      $region36: #{quaternion_max_amp_pool2d.1} parent=5 // pred_fallthru
        _
    $region6: #{quaternion_max_amp_pool2d.1} parent=1 // loop_footer
      %s14 = sadd.s32 1, %s10
    $region7: #{quaternion_max_amp_pool2d.1} parent=1 // loop_footer_branch
      %9 = sbr.rel target = $region3
    $region8: #{quaternion_max_amp_pool2d.1} parent=1 // loop_exit
      _
    %744 = vsyncpa [#allocation3], 1
    %s745 = scalar_lea.sflag [#allocation3], 1
    %746 = vsyncpa %s745, 1

</llo_original>
